<compile_context>
chip_gen: v5e
topology: v5e:2x2
jax: 0.10.0
libtpu: 0.0.40
codegen_flags: <defaults>
</compile_context>

<pallas_src>
import jax
import jax.numpy as jnp
from jax.experimental import pallas as pl
from jax.experimental.pallas import tpu as pltpu


def _pos_emb_copy_kernel(emb_hbm, out_hbm, sem):
    """Copy the first `sl` rows of the embedding table with one HBM->HBM DMA.

    Because the gathered indices are arange(0, sl), the gather IS this
    contiguous leading-row copy.
    """
    sl = out_hbm.shape[0]  # static
    cp = pltpu.make_async_copy(emb_hbm.at[pl.ds(0, sl), :], out_hbm, sem)
    cp.start()
    cp.wait()


def learned_position_embeddings_forward(x, emb_weight):
    """Returns positional embeddings for positions 0..x.shape[1]-1.

    Args:
      x: array whose second axis length `sl` determines how many positions to
         emit (its values/dtype are ignored, matching the PyTorch module).
      emb_weight: (seq_len, model_dim) embedding table.
    Returns:
      (sl, model_dim) array with emb_weight's dtype.
    """
    sl = x.shape[1]
    seq_len, model_dim = emb_weight.shape
    assert 1 <= sl <= seq_len, "sequence length exceeds the position table"
    dtype = emb_weight.dtype

    # Fast path: copying every row is an identity.
    if sl == seq_len:
        return emb_weight

    itemsize = jnp.dtype(dtype).itemsize
    bytes_moved = 2 * sl * model_dim * itemsize  # one read + one write of the slab

    return pl.pallas_call(
        _pos_emb_copy_kernel,
        out_shape=jax.ShapeDtypeStruct((sl, model_dim), dtype),
        in_specs=[pl.BlockSpec(memory_space=pl.ANY)],   # raw HBM ref, no auto-DMA
        out_specs=pl.BlockSpec(memory_space=pl.ANY),    # written directly by the DMA
        scratch_shapes=[pltpu.SemaphoreType.DMA(())],
        cost_estimate=pl.CostEstimate(
            flops=0, transcendentals=0, bytes_accessed=bytes_moved),
    )(emb_weight)


if __name__ == "__main__":
    # Module config (small, synthetic): seq_len=64 positions, model_dim=32.
    seq_len, model_dim, init = 64, 32, 0.02
    batch, sl = 2, 8  # x: (batch, sl) token ids — only sl matters.

    key = jax.random.PRNGKey(0)
    k_emb, k_x = jax.random.split(key)

    # Deterministic parameter init mirroring nn.Embedding + normal_(0, 0.02).
    emb_weight = (init * jax.random.normal(k_emb, (seq_len, model_dim))).astype(
        jnp.float32
    )

    # Dummy input; its dtype/values are irrelevant to the forward pass.
    x = jax.random.randint(k_x, (batch, sl), 0, seq_len, dtype=jnp.int32)

    out = learned_position_embeddings_forward(x, emb_weight)
    out = jax.block_until_ready(out)

    # Reference check: forward(x) == emb_weight[0:sl]  (bit-exact copy)
    ref = emb_weight[:sl]
    assert out.shape == (sl, model_dim)
    assert out.dtype == emb_weight.dtype
    assert jnp.array_equal(out, ref), "mismatch vs reference slice"

    print("KERNEL_OK")
</pallas_src>

<mosaic_0001>
module attributes {stable_mosaic.version = 11 : i64} {
  func.func @_pos_emb_copy_kernel(%arg0: memref<64x32xf32, #tpu.memory_space<any>>, %arg1: memref<8x32xf32, #tpu.memory_space<any>>, %arg2: memref<!tpu.dma_semaphore, #tpu.memory_space<semaphore_mem>>) attributes {dimension_semantics = [], scalar_prefetch = 0 : i64, scratch_operands = 1 : i64, tpu.core_type = #tpu.core_type<tc>} {
    %c0_i32 = arith.constant 0 : i32
    %c0_i32_0 = arith.constant 0 : i32
    %0 = tpu.memref_slice %arg0[%c0_i32, %c0_i32_0] : memref<64x32xf32, #tpu.memory_space<any>> -> memref<8x32xf32, #tpu.memory_space<any>>
    tpu.enqueue_dma source(%0 : memref<8x32xf32, #tpu.memory_space<any>>) target(%arg1 : memref<8x32xf32, #tpu.memory_space<any>>) target_semaphore(%arg2 : memref<!tpu.dma_semaphore, #tpu.memory_space<semaphore_mem>>)
    %c0_i32_1 = arith.constant 0 : i32
    %c0_i32_2 = arith.constant 0 : i32
    %1 = tpu.memref_slice %arg0[%c0_i32_1, %c0_i32_2] : memref<64x32xf32, #tpu.memory_space<any>> -> memref<8x32xf32, #tpu.memory_space<any>>
    tpu.wait_dma2 semaphore(%arg2 : memref<!tpu.dma_semaphore, #tpu.memory_space<semaphore_mem>>) src(%1 : memref<8x32xf32, #tpu.memory_space<any>>) dst(%arg1 : memref<8x32xf32, #tpu.memory_space<any>>)
    return
  }
}

</mosaic_0001>

<llo_original>
// kernel: tpu_custom_call.1
$region0: #{tpu_custom_call.1}
  #allocation0 [shape = 'u32[]', space=smem, size = 0x4, offset = 0x4, fixed_abs, tag = 'smem constant byte address 0x4 - core index']
  #allocation1 [shape = 'u32[72,128]{1,0:T(1,128)}', space=vmem, size = 0x9000, scoped, tag = 'internal scratch']
  #allocation2 [shape = 's32[1]{0}', space=sflag, size = 0x4, scoped, tag = 'scratch operand']
  #allocation3 [shape = 's32[]', space=sflag, size = 0x4, offset = 0, fixed_abs, tag = 'sflag constant byte address 0x0 - dummy sync flag']
  #allocation4 [shape = 's32[]', space=sflag, size = 0x4, offset = 0, fixed_abs, tag = 'sflag constant byte address 0x0 - dummy sync flag']
  #allocation5 [shape = 'u32[]', space=smem, size = 0x4, offset = 0x44, fixed_abs, tag = 'smem constant byte address 0x44 - assertion arg 0']
  #allocation6 [shape = 'u32[]', space=smem, size = 0x4, offset = 0x48, fixed_abs, tag = 'smem constant byte address 0x48 - assertion arg 1']
  %s0 = inlined_call_operand.vmem [shape: f32[64,32], index: 0, kind: input, shape index: {}]
  %s1 = inlined_call_operand.hbm [shape: f32[8,32], index: 1, kind: output, shape index: {}]
  %s2 = sld [smem:[#allocation0]]
  $region6: #{tpu_custom_call.1} parent=0
    _
  %s4 = ssub.s32 1, %s2
  %s5 = scalar_select 0, %s4, %s2
  // Predicated region
  $region2: #{tpu_custom_call.1} parent=0 // pred_check
    _
  $region3: #{tpu_custom_call.1} parent=0 // pred_check_branch
    %7 = sbr.rel target = $region5
  $region4: #{tpu_custom_call.1} parent=0 // pred_region
    %8 = sst [smem:[#allocation5]] [#allocation4]
    %9 = sst [smem:[#allocation6]] [#allocation3]
  $region5: #{tpu_custom_call.1} parent=0 // pred_fallthru
    _
  %11 = shalt.err (0)
  %s13 = sshll.u32 %s0, 4
  %s14 = int_to_ptr.vmem [resolvable:$true] %s13
  %s15 = sshll.u32 %s1, 4
  %s16 = int_to_ptr.hbm [resolvable:$true] %s15
  %18 = dma.vmem_to_hbm [thread:$0]  %s14, 128, %s16, [#allocation2]
  %s19 = smul.u32 8, 1
  %s20 = sshll.u32 %s19, 4
  %21 = dma.done [#allocation2], %s20
  %22 = vsyncmov [#allocation2]
  %s23 = vpop.sfrf %22
  %p24 = scmp.eq.s32.totalorder %s23, 0
  %p25 = pneg %p24
  %27 = shalt.err (%p25)

</llo_original>
